<compile_context>
chip_gen: v7x
topology: tpu7x:2x2x1
jax: 0.10.0
libtpu: 0.0.40
codegen_flags: <defaults>
</compile_context>

<pallas_src>
import jax
import jax.numpy as jnp
from jax.experimental import pallas as pl
from jax.experimental.pallas import tpu as pltpu


# ----------------------------- Pallas kernel ---------------------------------

def warp_kernel(x_ref, src_ref, o_ref):
    """out[bc, k] = x[bc, src[k]] if src[k] >= 0 else 0   (one-hot gather on the MXU)."""
    hw = o_ref.shape[-1]
    # S_T[m, k] = 1.0 iff m == src[k]; src == -1 never matches -> zero fill.
    m_idx = jax.lax.broadcasted_iota(jnp.int32, (hw, hw), 0)
    s_t = (m_idx == src_ref[...]).astype(jnp.float32)            # built on-chip, never in HBM
    o_ref[...] = jnp.dot(
        x_ref[...], s_t, preferred_element_type=jnp.float32
    ).astype(o_ref.dtype)


def apply_warp_pallas(x_flat, src):
    """x_flat: (BCp, HW) f32, src: (HW,) int32 (-1 => fill 0). Returns (BCp, HW)."""
    bcp, hw = x_flat.shape
    assert bcp % 8 == 0 and hw % 128 == 0
    src2d = src.reshape(1, hw)
    cost = pl.CostEstimate(
        flops=2 * bcp * hw * hw,
        transcendentals=0,
        bytes_accessed=(2 * bcp * hw + hw) * 4,
    )
    return pl.pallas_call(
        warp_kernel,
        out_shape=jax.ShapeDtypeStruct((bcp, hw), x_flat.dtype),
        grid_spec=pltpu.PrefetchScalarGridSpec(
            num_scalar_prefetch=0,
            grid=(1,),                                       # single block: all resident in VMEM
            in_specs=[
                pl.BlockSpec((bcp, hw), lambda i: (0, 0)),   # payload
                pl.BlockSpec((1, hw), lambda i: (0, 0)),     # source indices (tiny)
            ],
            out_specs=pl.BlockSpec((bcp, hw), lambda i: (0, 0)),
        ),
        cost_estimate=cost,
    )(x_flat, src2d)


# ------------------------- warp construction (JAX glue) ----------------------

def build_warp_indices(H, W, pad, max_deg, key, has_flip=True):
    """Compose crop(p=0.8) -> rotation(p=0.5) -> hflip(p=0.5) into a per-output-pixel
    source flat index (HW,) int32; -1 means 'out of bounds -> fill with 0'."""
    ks = jax.random.split(key, 6)
    apply_crop = jax.random.uniform(ks[0]) < 0.8
    apply_rot = jax.random.uniform(ks[1]) < 0.5
    apply_flip = jnp.logical_and(jax.random.uniform(ks[2]) < 0.5,
                                 jnp.asarray(has_flip))
    dy = jax.random.randint(ks[3], (), 0, 2 * pad + 1)          # crop top offset
    dx = jax.random.randint(ks[4], (), 0, 2 * pad + 1)          # crop left offset
    deg = jax.random.uniform(ks[5], (), minval=-max_deg, maxval=max_deg)
    theta = jnp.where(apply_rot, deg * jnp.pi / 180.0, 0.0)

    yy, xx = jnp.meshgrid(jnp.arange(H, dtype=jnp.float32),
                          jnp.arange(W, dtype=jnp.float32), indexing="ij")

    # invert hflip (it is applied last in forward)
    x2 = jnp.where(apply_flip, (W - 1) - xx, xx)
    y2 = yy

    # invert rotation about image center (nearest neighbor, fill=0)
    # TODO(synk): torchvision NEAREST uses a slightly different half-pixel rounding/center;
    # boundary pixels may differ from the PyTorch module by one index.
    cy, cx = (H - 1) / 2.0, (W - 1) / 2.0
    c, s = jnp.cos(theta), jnp.sin(theta)
    sx = c * (x2 - cx) + s * (y2 - cy) + cx
    sy = -s * (x2 - cx) + c * (y2 - cy) + cy
    j1 = jnp.round(sx)
    i1 = jnp.round(sy)
    valid = (i1 >= 0) & (i1 < H) & (j1 >= 0) & (j1 < W)

    # invert random crop of the zero-padded image
    i0 = jnp.where(apply_crop, i1 + dy - pad, i1)
    j0 = jnp.where(apply_crop, j1 + dx - pad, j1)
    valid = valid & (i0 >= 0) & (i0 < H) & (j0 >= 0) & (j0 < W)

    i0 = jnp.clip(i0, 0, H - 1).astype(jnp.int32)
    j0 = jnp.clip(j0, 0, W - 1).astype(jnp.int32)
    src = jnp.where(valid, i0 * W + j0, -1).reshape(-1).astype(jnp.int32)
    return src, valid.reshape(-1)


def post_tensor_transform(x, key, pad, max_deg, dataset="CIFAR10"):
    B, C, H, W = x.shape
    src, valid = build_warp_indices(H, W, pad, max_deg, key,
                                    has_flip=(dataset == "CIFAR10"))
    bc = B * C
    bcp = ((bc + 7) // 8) * 8           # pad MXU M-dim to full sublanes (unmasked stores)
    x_flat = x.reshape(bc, H * W)
    if bcp != bc:
        x_flat = jnp.pad(x_flat, ((0, bcp - bc), (0, 0)))
    out_flat = apply_warp_pallas(x_flat, src)[:bc]
    return out_flat.reshape(B, C, H, W), src, valid


# ----------------------------------- main -------------------------------------

if __name__ == "__main__":
    B, C, H, W = 2, 4, 16, 16     # BC = 8 -> full sublanes; HW = 256 -> lane-dense output
    pad = 2                       # random_crop padding
    max_deg = 10.0                # random_rotation degrees

    key = jax.random.PRNGKey(0)
    kx, kt = jax.random.split(key)
    x = jax.random.uniform(kx, (B, C, H, W), dtype=jnp.float32)

    out, src, valid = post_tensor_transform(x, kt, pad, max_deg, dataset="CIFAR10")
    out = jax.block_until_ready(out)

    # cross-check the Pallas one-hot-matmul gather against a direct jnp gather
    x_flat = x.reshape(B * C, H * W)
    gather_idx = jnp.clip(src, 0, H * W - 1)
    ref = (x_flat[:, gather_idx] * (src >= 0)[None, :].astype(x_flat.dtype)
           ).reshape(B, C, H, W)
    assert out.shape == x.shape and out.dtype == x.dtype
    assert jnp.allclose(out, ref, atol=1e-5), "mismatch vs reference gather"

    print("KERNEL_OK")
</pallas_src>

<mosaic_0001>
module attributes {stable_mosaic.version = 11 : i64} {
  func.func @warp_kernel(%arg0: i32, %arg1: memref<8x256xf32, #tpu.memory_space<vmem>>, %arg2: memref<1x256xi32, #tpu.memory_space<vmem>>, %arg3: memref<8x256xf32, #tpu.memory_space<vmem>>) attributes {dimension_semantics = [#tpu.dimension_semantics<arbitrary>], iteration_bounds = array<i64: 1>, scalar_prefetch = 0 : i64, scratch_operands = 0 : i64, tpu.core_type = #tpu.core_type<tc>, window_params = [{pipeline_mode = #tpu.pipeline_mode<synchronous>, transform_indices = @transform_0, window_bounds = array<i64: 8, 256>}, {pipeline_mode = #tpu.pipeline_mode<synchronous>, transform_indices = @transform_1, window_bounds = array<i64: 1, 256>}, {pipeline_mode = #tpu.pipeline_mode<synchronous>, transform_indices = @transform_2, window_bounds = array<i64: 8, 256>}]} {
    %0 = tpu.iota {dimensions = array<i32: 0>} : vector<256x256xi32>
    %c0 = arith.constant 0 : index
    %c0_0 = arith.constant 0 : index
    %1 = vector.load %arg2[%c0, %c0_0] : memref<1x256xi32, #tpu.memory_space<vmem>>, vector<1x256xi32>
    %2 = vector.broadcast %1 : vector<1x256xi32> to vector<256x256xi32>
    %3 = arith.cmpi eq, %0, %2 : vector<256x256xi32>
    %4 = arith.extui %3 : vector<256x256xi1> to vector<256x256xi32>
    %5 = arith.sitofp %4 : vector<256x256xi32> to vector<256x256xf32>
    %c0_1 = arith.constant 0 : index
    %c0_2 = arith.constant 0 : index
    %6 = vector.load %arg1[%c0_1, %c0_2] : memref<8x256xf32, #tpu.memory_space<vmem>>, vector<8x256xf32>
    %cst = arith.constant dense<0.000000e+00> : vector<8x256xf32>
    %7 = tpu.matmul %6, %5, %cst {dimension_numbers = #tpu.dot_dimension_numbers<[1], [0], [0], [1], [0, 0, 1, 1], [], []>} : vector<8x256xf32>, vector<256x256xf32>, vector<8x256xf32> -> vector<8x256xf32>
    %c0_3 = arith.constant 0 : index
    %c0_4 = arith.constant 0 : index
    %8 = vector.load %arg3[%c0_3, %c0_4] : memref<8x256xf32, #tpu.memory_space<vmem>>, vector<8x256xf32>
    tpu.vector_store %arg3[%c0_3, %c0_4], %7 {strides = array<i32>} : memref<8x256xf32, #tpu.memory_space<vmem>>, vector<8x256xf32>,
    return
  }
  func.func @transform_0(%arg0: i32) -> (i32, i32) {
    %c0_i32 = arith.constant 0 : i32
    %c0_i32_0 = arith.constant 0 : i32
    %c0_i32_1 = arith.constant 0 : i32
    return %c0_i32, %c0_i32_0 : i32, i32
  }
  func.func @transform_1(%arg0: i32) -> (i32, i32) {
    %c0_i32 = arith.constant 0 : i32
    %c0_i32_0 = arith.constant 0 : i32
    %c0_i32_1 = arith.constant 0 : i32
    return %c0_i32, %c0_i32_0 : i32, i32
  }
  func.func @transform_2(%arg0: i32) -> (i32, i32) {
    %c0_i32 = arith.constant 0 : i32
    %c0_i32_0 = arith.constant 0 : i32
    %c0_i32_1 = arith.constant 0 : i32
    return %c0_i32, %c0_i32_0 : i32, i32
  }
}

</mosaic_0001>

<llo_original>
// kernel: tpu_custom_call.1
$region0: #{tpu_custom_call.1}
  #allocation0 [shape = 'u32[]', space=smem, size = 0x4, offset = 0x4, fixed_abs, tag = 'smem constant byte address 0x4 - core index']
  #allocation1 [shape = 'u32[144,128]{1,0:T(1,128)}', space=vmem, size = 0x12000, scoped, tag = 'internal scratch']
  %s0 = inlined_call_operand.hbm [shape: f32[8,256], index: 0, kind: input, shape index: {}]
  %s1 = inlined_call_operand.vmem [shape: s32[1,256], index: 1, kind: input, shape index: {}]
  %s2 = inlined_call_operand.hbm [shape: f32[8,256], index: 2, kind: output, shape index: {}]
  %s3 = sld [smem:[#allocation0]]
  $region22: #{tpu_custom_call.1} parent=0
    _
  %s5 = ssub.s32 1, %s3
  %s6 = scalar_select 0, %s5, %s3
  $region1: #{tpu_custom_call.1} parent=0
    #allocation2 [shape = 'u8[8192]{0}', space=vmem, size = 0x2000, scoped, tag = 'input window, operand 0, single buffered']
    #allocation3 [shape = 's32[1]{0}', space=sflag, size = 0x4, scoped, tag = 'scoped memory for tpu_custom_call.1']
    #allocation4 [shape = 's32[1]{0}', space=sflag, size = 0x4, scoped, tag = 'scoped memory for tpu_custom_call.1']
    #allocation5 [shape = 'u8[8192]{0}', space=vmem, size = 0x2000, scoped, tag = 'output window, operand 0, single buffered']
    %7 = vsyncpa [#allocation3], 0
    %8 = vsyncpa [#allocation4], 0
    // Predicated region
    $region2: #{tpu_custom_call.1} parent=1 // pred_check
      _
    $region3: #{tpu_custom_call.1} parent=1 // pred_check_branch
      %10 = sbr.rel (0) target = $region5
    $region4: #{tpu_custom_call.1} parent=1 // pred_region
      %s12 = ssub.s32 256, 256
      %13 = vsyncadd [#allocation3], %s12
      %s15 = sshll.u32 [#allocation2], 4
      %s16 = int_to_ptr.vmem [resolvable:$true] %s15
      %18 = dma.hbm_to_vmem [thread:$0]  %s0, 256, %s16, [#allocation3]
    $region5: #{tpu_custom_call.1} parent=1 // pred_fallthru
      _
    // Predicated region
    $region6: #{tpu_custom_call.1} parent=1 // pred_check
      _
    $region7: #{tpu_custom_call.1} parent=1 // pred_check_branch
      %20 = sbr.rel (0) target = $region9
    $region8: #{tpu_custom_call.1} parent=1 // pred_region
      _
    $region9: #{tpu_custom_call.1} parent=1 // pred_fallthru
      _
    // Predicated region
    $region10: #{tpu_custom_call.1} parent=1 // pred_check
      _
    $region11: #{tpu_custom_call.1} parent=1 // pred_check_branch
      %22 = sbr.rel (0) target = $region13
    $region12: #{tpu_custom_call.1} parent=1 // pred_region
      %23 = dma.done [#allocation3], 256
    $region13: #{tpu_custom_call.1} parent=1 // pred_fallthru
      _
    %v24 = vlaneseq
    %v25 = vshrl.u32 %v24, 7
    %v26 = vadd.s32 %v25, 8
    %v27 = vadd.s32 %v25, 16
    %v28 = vadd.s32 %v25, 24
    %v29 = vadd.s32 %v25, 32
    %v30 = vadd.s32 %v25, 40
    %v31 = vadd.s32 %v25, 48
    %v32 = vadd.s32 %v25, 56
    %v33 = vadd.s32 %v25, 64
    %v34 = vadd.s32 %v25, 72
    %v35 = vadd.s32 %v25, 80
    %v36 = vadd.s32 %v25, 88
    %v37 = vadd.s32 %v25, 96
    %v38 = vadd.s32 %v25, 104
    %v39 = vadd.s32 %v25, 112
    %v40 = vadd.s32 %v25, 120
    %v41 = vadd.s32 %v25, 128
    %v42 = vadd.s32 %v25, 136
    %v43 = vadd.s32 %v25, 144
    %v44 = vadd.s32 %v25, 152
    %v45 = vadd.s32 %v25, 160
    %v46 = vadd.s32 %v25, 168
    %v47 = vadd.s32 %v25, 176
    %v48 = vadd.s32 %v25, 184
    %v49 = vadd.s32 %v25, 192
    %v50 = vadd.s32 %v25, 200
    %v51 = vadd.s32 %v25, 208
    %v52 = vadd.s32 %v25, 216
    %v53 = vadd.s32 %v25, 224
    %v54 = vadd.s32 %v25, 232
    %v55 = vadd.s32 %v25, 240
    %v56 = vadd.s32 %v25, 248
    %v57 = vld [vmem:[%s1] sm:$0x3]
    %v58 = vlaneseq
    %v59 = vshrl.u32 %v58, 7
    %v60 = vsub.s32 0, %v59
    %v61 = vrot.slane %v57, %v60
    %v62 = vlaneseq
    %v63 = vshrl.u32 %v62, 7
    %v64 = vsub.s32 1, %v63
    %v65 = vrot.slane %v57, %v64
    %vm66 = vcmp.eq.s32.totalorder %v25, %v61
    %vm67 = vcmp.eq.s32.totalorder %v25, %v65
    %vm68 = vcmp.eq.s32.totalorder %v26, %v61
    %vm69 = vcmp.eq.s32.totalorder %v26, %v65
    %vm70 = vcmp.eq.s32.totalorder %v27, %v61
    %vm71 = vcmp.eq.s32.totalorder %v27, %v65
    %vm72 = vcmp.eq.s32.totalorder %v28, %v61
    %vm73 = vcmp.eq.s32.totalorder %v28, %v65
    %vm74 = vcmp.eq.s32.totalorder %v29, %v61
    %vm75 = vcmp.eq.s32.totalorder %v29, %v65
    %vm76 = vcmp.eq.s32.totalorder %v30, %v61
    %vm77 = vcmp.eq.s32.totalorder %v30, %v65
    %vm78 = vcmp.eq.s32.totalorder %v31, %v61
    %vm79 = vcmp.eq.s32.totalorder %v31, %v65
    %vm80 = vcmp.eq.s32.totalorder %v32, %v61
    %vm81 = vcmp.eq.s32.totalorder %v32, %v65
    %vm82 = vcmp.eq.s32.totalorder %v33, %v61
    %vm83 = vcmp.eq.s32.totalorder %v33, %v65
    %vm84 = vcmp.eq.s32.totalorder %v34, %v61
    %vm85 = vcmp.eq.s32.totalorder %v34, %v65
    %vm86 = vcmp.eq.s32.totalorder %v35, %v61
    %vm87 = vcmp.eq.s32.totalorder %v35, %v65
    %vm88 = vcmp.eq.s32.totalorder %v36, %v61
    %vm89 = vcmp.eq.s32.totalorder %v36, %v65
    %vm90 = vcmp.eq.s32.totalorder %v37, %v61
    %vm91 = vcmp.eq.s32.totalorder %v37, %v65
    %vm92 = vcmp.eq.s32.totalorder %v38, %v61
    %vm93 = vcmp.eq.s32.totalorder %v38, %v65
    %vm94 = vcmp.eq.s32.totalorder %v39, %v61
    %vm95 = vcmp.eq.s32.totalorder %v39, %v65
    %vm96 = vcmp.eq.s32.totalorder %v40, %v61
    %vm97 = vcmp.eq.s32.totalorder %v40, %v65
    %vm98 = vcmp.eq.s32.totalorder %v41, %v61
    %vm99 = vcmp.eq.s32.totalorder %v41, %v65
    %vm100 = vcmp.eq.s32.totalorder %v42, %v61
    %vm101 = vcmp.eq.s32.totalorder %v42, %v65
    %vm102 = vcmp.eq.s32.totalorder %v43, %v61
    %vm103 = vcmp.eq.s32.totalorder %v43, %v65
    %vm104 = vcmp.eq.s32.totalorder %v44, %v61
    %vm105 = vcmp.eq.s32.totalorder %v44, %v65
    %vm106 = vcmp.eq.s32.totalorder %v45, %v61
    %vm107 = vcmp.eq.s32.totalorder %v45, %v65
    %vm108 = vcmp.eq.s32.totalorder %v46, %v61
    %vm109 = vcmp.eq.s32.totalorder %v46, %v65
    %vm110 = vcmp.eq.s32.totalorder %v47, %v61
    %vm111 = vcmp.eq.s32.totalorder %v47, %v65
    %vm112 = vcmp.eq.s32.totalorder %v48, %v61
    %vm113 = vcmp.eq.s32.totalorder %v48, %v65
    %vm114 = vcmp.eq.s32.totalorder %v49, %v61
    %vm115 = vcmp.eq.s32.totalorder %v49, %v65
    %vm116 = vcmp.eq.s32.totalorder %v50, %v61
    %vm117 = vcmp.eq.s32.totalorder %v50, %v65
    %vm118 = vcmp.eq.s32.totalorder %v51, %v61
    %vm119 = vcmp.eq.s32.totalorder %v51, %v65
    %vm120 = vcmp.eq.s32.totalorder %v52, %v61
    %vm121 = vcmp.eq.s32.totalorder %v52, %v65
    %vm122 = vcmp.eq.s32.totalorder %v53, %v61
    %vm123 = vcmp.eq.s32.totalorder %v53, %v65
    %vm124 = vcmp.eq.s32.totalorder %v54, %v61
    %vm125 = vcmp.eq.s32.totalorder %v54, %v65
    %vm126 = vcmp.eq.s32.totalorder %v55, %v61
    %vm127 = vcmp.eq.s32.totalorder %v55, %v65
    %vm128 = vcmp.eq.s32.totalorder %v56, %v61
    %vm129 = vcmp.eq.s32.totalorder %v56, %v65
    %v130 = vsel %vm66, 1, 0
    %v131 = vsel %vm67, 1, 0
    %v132 = vsel %vm68, 1, 0
    %v133 = vsel %vm69, 1, 0
    %v134 = vsel %vm70, 1, 0
    %v135 = vsel %vm71, 1, 0
    %v136 = vsel %vm72, 1, 0
    %v137 = vsel %vm73, 1, 0
    %v138 = vsel %vm74, 1, 0
    %v139 = vsel %vm75, 1, 0
    %v140 = vsel %vm76, 1, 0
    %v141 = vsel %vm77, 1, 0
    %v142 = vsel %vm78, 1, 0
    %v143 = vsel %vm79, 1, 0
    %v144 = vsel %vm80, 1, 0
    %v145 = vsel %vm81, 1, 0
    %v146 = vsel %vm82, 1, 0
    %v147 = vsel %vm83, 1, 0
    %v148 = vsel %vm84, 1, 0
    %v149 = vsel %vm85, 1, 0
    %v150 = vsel %vm86, 1, 0
    %v151 = vsel %vm87, 1, 0
    %v152 = vsel %vm88, 1, 0
    %v153 = vsel %vm89, 1, 0
    %v154 = vsel %vm90, 1, 0
    %v155 = vsel %vm91, 1, 0
    %v156 = vsel %vm92, 1, 0
    %v157 = vsel %vm93, 1, 0
    %v158 = vsel %vm94, 1, 0
    %v159 = vsel %vm95, 1, 0
    %v160 = vsel %vm96, 1, 0
    %v161 = vsel %vm97, 1, 0
    %v162 = vsel %vm98, 1, 0
    %v163 = vsel %vm99, 1, 0
    %v164 = vsel %vm100, 1, 0
    %v165 = vsel %vm101, 1, 0
    %v166 = vsel %vm102, 1, 0
    %v167 = vsel %vm103, 1, 0
    %v168 = vsel %vm104, 1, 0
    %v169 = vsel %vm105, 1, 0
    %v170 = vsel %vm106, 1, 0
    %v171 = vsel %vm107, 1, 0
    %v172 = vsel %vm108, 1, 0
    %v173 = vsel %vm109, 1, 0
    %v174 = vsel %vm110, 1, 0
    %v175 = vsel %vm111, 1, 0
    %v176 = vsel %vm112, 1, 0
    %v177 = vsel %vm113, 1, 0
    %v178 = vsel %vm114, 1, 0
    %v179 = vsel %vm115, 1, 0
    %v180 = vsel %vm116, 1, 0
    %v181 = vsel %vm117, 1, 0
    %v182 = vsel %vm118, 1, 0
    %v183 = vsel %vm119, 1, 0
    %v184 = vsel %vm120, 1, 0
    %v185 = vsel %vm121, 1, 0
    %v186 = vsel %vm122, 1, 0
    %v187 = vsel %vm123, 1, 0
    %v188 = vsel %vm124, 1, 0
    %v189 = vsel %vm125, 1, 0
    %v190 = vsel %vm126, 1, 0
    %v191 = vsel %vm127, 1, 0
    %v192 = vsel %vm128, 1, 0
    %v193 = vsel %vm129, 1, 0
    %v194 = vcvt.s32.f32 %v130
    %v195 = vcvt.s32.f32 %v131
    %v196 = vcvt.s32.f32 %v132
    %v197 = vcvt.s32.f32 %v133
    %v198 = vcvt.s32.f32 %v134
    %v199 = vcvt.s32.f32 %v135
    %v200 = vcvt.s32.f32 %v136
    %v201 = vcvt.s32.f32 %v137
    %v202 = vcvt.s32.f32 %v138
    %v203 = vcvt.s32.f32 %v139
    %v204 = vcvt.s32.f32 %v140
    %v205 = vcvt.s32.f32 %v141
    %v206 = vcvt.s32.f32 %v142
    %v207 = vcvt.s32.f32 %v143
    %v208 = vcvt.s32.f32 %v144
    %v209 = vcvt.s32.f32 %v145
    %v210 = vcvt.s32.f32 %v146
    %v211 = vcvt.s32.f32 %v147
    %v212 = vcvt.s32.f32 %v148
    %v213 = vcvt.s32.f32 %v149
    %v214 = vcvt.s32.f32 %v150
    %v215 = vcvt.s32.f32 %v151
    %v216 = vcvt.s32.f32 %v152
    %v217 = vcvt.s32.f32 %v153
    %v218 = vcvt.s32.f32 %v154
    %v219 = vcvt.s32.f32 %v155
    %v220 = vcvt.s32.f32 %v156
    %v221 = vcvt.s32.f32 %v157
    %v222 = vcvt.s32.f32 %v158
    %v223 = vcvt.s32.f32 %v159
    %v224 = vcvt.s32.f32 %v160
    %v225 = vcvt.s32.f32 %v161
    %v226 = vcvt.s32.f32 %v162
    %v227 = vcvt.s32.f32 %v163
    %v228 = vcvt.s32.f32 %v164
    %v229 = vcvt.s32.f32 %v165
    %v230 = vcvt.s32.f32 %v166
    %v231 = vcvt.s32.f32 %v167
    %v232 = vcvt.s32.f32 %v168
    %v233 = vcvt.s32.f32 %v169
    %v234 = vcvt.s32.f32 %v170
    %v235 = vcvt.s32.f32 %v171
    %v236 = vcvt.s32.f32 %v172
    %v237 = vcvt.s32.f32 %v173
    %v238 = vcvt.s32.f32 %v174
    %v239 = vcvt.s32.f32 %v175
    %v240 = vcvt.s32.f32 %v176
    %v241 = vcvt.s32.f32 %v177
    %v242 = vcvt.s32.f32 %v178
    %v243 = vcvt.s32.f32 %v179
    %v244 = vcvt.s32.f32 %v180
    %v245 = vcvt.s32.f32 %v181
    %v246 = vcvt.s32.f32 %v182
    %v247 = vcvt.s32.f32 %v183
    %v248 = vcvt.s32.f32 %v184
    %v249 = vcvt.s32.f32 %v185
    %v250 = vcvt.s32.f32 %v186
    %v251 = vcvt.s32.f32 %v187
    %v252 = vcvt.s32.f32 %v188
    %v253 = vcvt.s32.f32 %v189
    %v254 = vcvt.s32.f32 %v190
    %v255 = vcvt.s32.f32 %v191
    %v256 = vcvt.s32.f32 %v192
    %v257 = vcvt.s32.f32 %v193
    %v258 = vld [vmem:[#allocation2] sm:$0xff]
    %v259 = vld [vmem:[#allocation2 + $0x8] sm:$0xff]
    %260 = vmatprep.subr.mxu0 %v195
    %261 = vmatpush1.msra.mxu0 %v194
    %262 = vmatprep.subr.mxu0 %v197
    %263 = vmatpush1.msra.mxu0 %v196
    %264 = vmatprep.subr.mxu0 %v199
    %265 = vmatpush1.msra.mxu0 %v198
    %266 = vmatprep.subr.mxu0 %v201
    %267 = vmatpush1.msra.mxu0 %v200
    %268 = vmatprep.subr.mxu0 %v203
    %269 = vmatpush1.msra.mxu0 %v202
    %270 = vmatprep.subr.mxu0 %v205
    %271 = vmatpush1.msra.mxu0 %v204
    %272 = vmatprep.subr.mxu0 %v207
    %273 = vmatpush1.msra.mxu0 %v206
    %274 = vmatprep.subr.mxu0 %v209
    %275 = vmatpush1.msra.mxu0 %v208
    %276 = vmatprep.subr.mxu0 %v211
    %277 = vmatpush1.msra.mxu0 %v210
    %278 = vmatprep.subr.mxu0 %v213
    %279 = vmatpush1.msra.mxu0 %v212
    %280 = vmatprep.subr.mxu0 %v215
    %281 = vmatpush1.msra.mxu0 %v214
    %282 = vmatprep.subr.mxu0 %v217
    %283 = vmatpush1.msra.mxu0 %v216
    %284 = vmatprep.subr.mxu0 %v219
    %285 = vmatpush1.msra.mxu0 %v218
    %286 = vmatprep.subr.mxu0 %v221
    %287 = vmatpush1.msra.mxu0 %v220
    %288 = vmatprep.subr.mxu0 %v223
    %289 = vmatpush1.msra.mxu0 %v222
    %290 = vmatprep.subr.mxu0 %v225
    %291 = vmatpush1.msra.mxu0 %v224
    %292 = vmatprep.subr.mxu0 %v227
    %293 = vmatpush1.msra.mxu0 %v226
    %294 = vmatprep.subr.mxu0 %v229
    %295 = vmatpush1.msra.mxu0 %v228
    %296 = vmatprep.subr.mxu0 %v231
    %297 = vmatpush1.msra.mxu0 %v230
    %298 = vmatprep.subr.mxu0 %v233
    %299 = vmatpush1.msra.mxu0 %v232
    %300 = vmatprep.subr.mxu0 %v235
    %301 = vmatpush1.msra.mxu0 %v234
    %302 = vmatprep.subr.mxu0 %v237
    %303 = vmatpush1.msra.mxu0 %v236
    %304 = vmatprep.subr.mxu0 %v239
    %305 = vmatpush1.msra.mxu0 %v238
    %306 = vmatprep.subr.mxu0 %v241
    %307 = vmatpush1.msra.mxu0 %v240
    %308 = vmatprep.subr.mxu0 %v243
    %309 = vmatpush1.msra.mxu0 %v242
    %310 = vmatprep.subr.mxu0 %v245
    %311 = vmatpush1.msra.mxu0 %v244
    %312 = vmatprep.subr.mxu0 %v247
    %313 = vmatpush1.msra.mxu0 %v246
    %314 = vmatprep.subr.mxu0 %v249
    %315 = vmatpush1.msra.mxu0 %v248
    %316 = vmatprep.subr.mxu0 %v251
    %317 = vmatpush1.msra.mxu0 %v250
    %318 = vmatprep.subr.mxu0 %v253
    %319 = vmatpush1.msra.mxu0 %v252
    %320 = vmatprep.subr.mxu0 %v255
    %321 = vmatpush1.msra.mxu0 %v254
    %322 = vmatprep.subr.mxu0 %v257
    %323 = vmatpush1.msra.mxu0 %v256
    %324 = vmatprep.mubr.f32.mxu0 %v259
    %325 = vmatmul.mubr.f32.gmra.mrb[0].mxu0 %v258
    %v326 = vpop.f32.mrb[0].mxu0
    %v327 = vadd.f32 0.0, %v326
    %v328 = vpop.f32.mrb[0].mxu0
    %v329 = vadd.f32 0.0, %v328
    %330 = vdwg.mxu0
    %331 = vst [vmem:[#allocation5] sm:$0xff] %v327
    %332 = vst [vmem:[#allocation5 + $0x8] sm:$0xff] %v329
    // Predicated region
    $region14: #{tpu_custom_call.1} parent=1 // pred_check
      _
    $region15: #{tpu_custom_call.1} parent=1 // pred_check_branch
      %334 = sbr.rel (0) target = $region17
    $region16: #{tpu_custom_call.1} parent=1 // pred_region
      %s336 = ssub.s32 256, 256
      %337 = vsyncadd [#allocation4], %s336
      %s339 = sshll.u32 [#allocation5], 4
      %s340 = int_to_ptr.vmem [resolvable:$true] %s339
      %342 = dma.vmem_to_hbm [thread:$0]  %s340, 256, %s2, [#allocation4]
    $region17: #{tpu_custom_call.1} parent=1 // pred_fallthru
      _
    // Predicated region
    $region18: #{tpu_custom_call.1} parent=1 // pred_check
      _
    $region19: #{tpu_custom_call.1} parent=1 // pred_check_branch
      %344 = sbr.rel (0) target = $region21
    $region20: #{tpu_custom_call.1} parent=1 // pred_region
      %345 = dma.done [#allocation4], 256
    $region21: #{tpu_custom_call.1} parent=1 // pred_fallthru
      _
    %346 = vsyncpa [#allocation3], 1
    %347 = vsyncpa [#allocation4], 1

</llo_original>
